<compile_context>
chip_gen: v6e
topology: v6e:2x2x1
jax: 0.10.0
libtpu: 0.0.40
codegen_flags: <defaults>
</compile_context>

<pallas_src>
import functools

import jax
import jax.numpy as jnp
from jax.experimental import pallas as pl
from jax.experimental.pallas import tpu as pltpu

_LANES = 128


def _hw_params():
    """Per-generation knobs: (vmem_limit_bytes, tile_rows)."""
    try:
        cap = pltpu.get_tpu_info().vmem_capacity_bytes
    except Exception:  # unknown part -> proven-conservative settings
        return 32 * 1024 * 1024, 2048
    if cap >= 100 * 1024 * 1024:
        # v5e / v6e: 128 MiB physical VMEM, ~0.8-1.4 TB/s HBM.
        return 96 * 1024 * 1024, 4096
    # v7x: 64 MiB physical VMEM per TC but ~3.2 TB/s HBM -> bigger tiles to
    # re-amortize the fixed per-grid-step overhead; keep limit well under 64.
    return 48 * 1024 * 1024, 8192


def _widen_for_reduce(x):
    # min/max are exact in any dtype; keep f32 native (no extra copy), widen
    # packed (sub-32-bit) dtypes first -- the proven lowering path for them.
    return x if x.dtype == jnp.float32 else x.astype(jnp.float32)


def _fused_kernel(x_ref, o_ref):
    """Small-input fast path: min/max + normalize in one body (slab in VMEM)."""
    x = x_ref[...]
    xr = _widen_for_reduce(x)
    mn = jnp.min(xr).astype(jnp.float32)
    mx = jnp.max(xr).astype(jnp.float32)
    inv = 1.0 / (mx - mn)
    o_ref[...] = ((x.astype(jnp.float32) - mn) * inv).astype(o_ref.dtype)


def _minmax_partial_kernel(x_ref, pmin_ref, pmax_ref, *,
                           valid_rows, mask_needed, out_rows):
    """Per-tile partial min/max -> lane-dense (out_rows, 128) f32 outputs."""
    tr = x_ref.shape[0]

    def _reduce_and_store(xmin, xmax):
        if out_rows == 8:
            # (tr,128) -> (tr//8, 8, 128): leading-dim split only (layout no-op),
            # reduce over the leading axis -> full (8,128) tile, unmasked store.
            xmin = xmin.reshape(tr // 8, 8, _LANES)
            xmax = xmax.reshape(tr // 8, 8, _LANES)
            pmin_ref[...] = jnp.min(xmin, axis=0).astype(jnp.float32)
            pmax_ref[...] = jnp.max(xmax, axis=0).astype(jnp.float32)
        else:
            pmin_ref[...] = jnp.min(xmin, axis=0, keepdims=True).astype(jnp.float32)
            pmax_ref[...] = jnp.max(xmax, axis=0, keepdims=True).astype(jnp.float32)

    if not mask_needed:
        xr = _widen_for_reduce(x_ref[...])
        _reduce_and_store(xr, xr)
    else:
        i = pl.program_id(0)
        last = pl.num_programs(0) - 1

        @pl.when(i != last)
        def _():
            # Full tiles: pure load + reduce, no per-element mask work.
            xr = _widen_for_reduce(x_ref[...])
            _reduce_and_store(xr, xr)

        @pl.when(i == last)
        def _():
            # Ragged last tile only: mask rows beyond the real row count.
            xf = x_ref[...].astype(jnp.float32)
            row_ids = jax.lax.broadcasted_iota(jnp.int32, (tr, _LANES), 0) + i * tr
            valid = row_ids < valid_rows
            _reduce_and_store(jnp.where(valid, xf, jnp.inf),
                              jnp.where(valid, xf, -jnp.inf))


def _norm_kernel(mn_ref, inv_ref, x_ref, o_ref):
    """o = (x - mn) * inv; mn/inv are (1,1) f32 scalars in SMEM."""
    mn = mn_ref[0, 0]
    inv = inv_ref[0, 0]
    o_ref[...] = ((x_ref[...].astype(jnp.float32) - mn) * inv).astype(o_ref.dtype)


def lin_norm(x, *, tile_rows=None, fused_max_bytes=None):
    """Pallas LinNorm.forward: (x - x.min()) / (x.max() - x.min())."""
    orig_shape = x.shape
    orig_dtype = x.dtype
    n = x.size
    if n == 0:
        return x

    vmem_limit, auto_tile_rows = _hw_params()
    if tile_rows is None:
        tile_rows = auto_tile_rows
    if fused_max_bytes is None:
        # Peak fused-path VMEM ~ in(+double buf) + out(+double buf) + f32 temps,
        # measured in native bytes: ~6x for 32-bit inputs, ~10x for packed ones.
        factor = 8 if x.dtype.itemsize >= 4 else 12
        fused_max_bytes = vmem_limit // factor

    flat = x.reshape(-1)  # metadata-only for contiguous input (native dtype)
    pad = (-n) % _LANES
    if pad:
        # TODO(synk): zero-copy ragged path (see header comment).
        flat = jnp.concatenate([flat, jnp.full((pad,), flat[0], flat.dtype)])
    rows = (n + pad) // _LANES
    x2 = flat.reshape(rows, _LANES)

    if flat.dtype.itemsize * flat.size <= fused_max_bytes:
        # ---- small/mid-input fast path: single fused kernel, 2N HBM traffic ----
        y2 = pl.pallas_call(
            _fused_kernel,
            out_shape=jax.ShapeDtypeStruct((rows, _LANES), orig_dtype),
            grid=(1,),
            in_specs=[pl.BlockSpec((rows, _LANES), lambda i: (0, 0))],
            out_specs=pl.BlockSpec((rows, _LANES), lambda i: (0, 0)),
            compiler_params=pltpu.CompilerParams(vmem_limit_bytes=vmem_limit),
        )(x2)
    else:
        # big blocks: keep second-minor a multiple of 8 unless it is the full dim
        tr = min(tile_rows, rows)
        if tr < rows:
            tr = min(rows, max(8, (tr // 8) * 8))
        num_tiles = pl.cdiv(rows, tr)
        mask_needed = (rows % tr) != 0
        out_rows = 8 if tr % 8 == 0 else 1

        # ---- pass 1: per-tile partial min/max, "parallel" grid axis ----
        pass1 = functools.partial(
            _minmax_partial_kernel, valid_rows=rows,
            mask_needed=mask_needed, out_rows=out_rows)
        pmin, pmax = pl.pallas_call(
            pass1,
            out_shape=(
                jax.ShapeDtypeStruct((num_tiles * out_rows, _LANES), jnp.float32),
                jax.ShapeDtypeStruct((num_tiles * out_rows, _LANES), jnp.float32),
            ),
            grid=(num_tiles,),
            in_specs=[pl.BlockSpec((tr, _LANES), lambda i: (i, 0))],
            out_specs=(
                pl.BlockSpec((out_rows, _LANES), lambda i: (i, 0)),
                pl.BlockSpec((out_rows, _LANES), lambda i: (i, 0)),
            ),
            compiler_params=pltpu.CompilerParams(
                dimension_semantics=("parallel",),
                vmem_limit_bytes=vmem_limit),
        )(x2)
        mn = jnp.min(pmin)
        mx = jnp.max(pmax)
        inv = (1.0 / (mx - mn)).reshape(1, 1)   # divide hoisted out of the kernel
        mn = mn.reshape(1, 1)

        # ---- pass 2: elementwise normalize with (mn, inv) scalars in SMEM ----
        y2 = pl.pallas_call(
            _norm_kernel,
            out_shape=jax.ShapeDtypeStruct((rows, _LANES), orig_dtype),
            grid=(num_tiles,),
            in_specs=[
                pl.BlockSpec(memory_space=pltpu.SMEM),
                pl.BlockSpec(memory_space=pltpu.SMEM),
                pl.BlockSpec((tr, _LANES), lambda i: (i, 0)),
            ],
            out_specs=pl.BlockSpec((tr, _LANES), lambda i: (i, 0)),
            compiler_params=pltpu.CompilerParams(
                dimension_semantics=("parallel",),
                vmem_limit_bytes=vmem_limit),
        )(mn, inv, x2)

    y_flat = y2.reshape(-1)
    if pad:
        y_flat = y_flat[:n]
    return y_flat.reshape(orig_shape)


def _ref_lin_norm(x):
    xf = x.astype(jnp.float32)
    return ((xf - xf.min()) / (xf.max() - xf.min())).astype(x.dtype)


if __name__ == "__main__":
    key = jax.random.PRNGKey(0)
    k1, k2, k3 = jax.random.split(key, 3)

    # 1) small NCHW input -> fused fast path
    x1 = jax.random.normal(k1, (2, 4, 16, 16), dtype=jnp.float32) * 3.0 + 1.5
    y1 = jax.block_until_ready(jax.jit(lin_norm)(x1))
    assert y1.shape == x1.shape and y1.dtype == x1.dtype
    assert jnp.allclose(y1, _ref_lin_norm(x1), atol=1e-6, rtol=1e-6)

    # 2) force the two-pass (tiled) path on the same data, exact tiling
    f2 = jax.jit(functools.partial(lin_norm, tile_rows=8, fused_max_bytes=0))
    y2 = jax.block_until_ready(f2(x1))
    assert jnp.allclose(y2, _ref_lin_norm(x1), atol=1e-6, rtol=1e-6)

    # 3) two-pass path with a ragged trailing block (rows=24, tile_rows=16)
    #    -> exercises the pl.when-gated last-tile masking
    x3 = jax.random.normal(k2, (2, 4, 16, 24), dtype=jnp.float32) * 2.0 - 0.7
    f3 = jax.jit(functools.partial(lin_norm, tile_rows=16, fused_max_bytes=0))
    y3 = jax.block_until_ready(f3(x3))
    assert jnp.allclose(y3, _ref_lin_norm(x3), atol=1e-6, rtol=1e-6)

    # 4) numel not a multiple of 128 (pad fallback) + bf16 input
    x4 = (jax.random.normal(k3, (3, 5, 7), dtype=jnp.float32) * 5.0).astype(jnp.bfloat16)
    y4 = jax.block_until_ready(jax.jit(lin_norm)(x4))
    assert y4.shape == x4.shape and y4.dtype == x4.dtype
    assert jnp.allclose(y4.astype(jnp.float32),
                        _ref_lin_norm(x4).astype(jnp.float32),
                        atol=1e-2, rtol=1e-2)

    print("KERNEL_OK")
</pallas_src>

<mosaic_0001>
module attributes {stable_mosaic.version = 11 : i64} {
  func.func @_fused_kernel(%arg0: i32, %arg1: memref<16x128xf32, #tpu.memory_space<vmem>>, %arg2: memref<16x128xf32, #tpu.memory_space<vmem>>) attributes {dimension_semantics = [#tpu.dimension_semantics<arbitrary>], iteration_bounds = array<i64: 1>, scalar_prefetch = 0 : i64, scratch_operands = 0 : i64, tpu.core_type = #tpu.core_type<tc>, window_params = [{pipeline_mode = #tpu.pipeline_mode<synchronous>, transform_indices = @transform_0, window_bounds = array<i64: 16, 128>}, {pipeline_mode = #tpu.pipeline_mode<synchronous>, transform_indices = @transform_1, window_bounds = array<i64: 16, 128>}]} {
    %c0 = arith.constant 0 : index
    %c0_0 = arith.constant 0 : index
    %0 = vector.load %arg1[%c0, %c0_0] : memref<16x128xf32, #tpu.memory_space<vmem>>, vector<16x128xf32>
    %1 = vector.shape_cast %0 : vector<16x128xf32> to vector<1x16x128xf32>
    %cst = arith.constant dense<0x7F800000> : vector<1xf32>
    %2 = vector.multi_reduction <minimumf>, %1, %cst [1, 2] : vector<1x16x128xf32> to vector<1xf32>
    %3 = vector.shape_cast %2 : vector<1xf32> to vector<1x1x1xf32>
    %4 = vector.extract %3[0, 0, 0] : f32 from vector<1x1x1xf32>
    %5 = vector.shape_cast %0 : vector<16x128xf32> to vector<1x16x128xf32>
    %cst_1 = arith.constant dense<0xFF800000> : vector<1xf32>
    %6 = vector.multi_reduction <maximumf>, %5, %cst_1 [1, 2] : vector<1x16x128xf32> to vector<1xf32>
    %7 = vector.shape_cast %6 : vector<1xf32> to vector<1x1x1xf32>
    %8 = vector.extract %7[0, 0, 0] : f32 from vector<1x1x1xf32>
    %9 = arith.subf %8, %4 : f32
    %cst_2 = arith.constant 1.000000e+00 : f32
    %10 = arith.divf %cst_2, %9 : f32
    %11 = vector.broadcast %4 : f32 to vector<16x128xf32>
    %12 = arith.subf %0, %11 : vector<16x128xf32>
    %13 = vector.broadcast %10 : f32 to vector<16x128xf32>
    %14 = arith.mulf %12, %13 : vector<16x128xf32>
    %c0_3 = arith.constant 0 : index
    %c0_4 = arith.constant 0 : index
    %15 = vector.load %arg2[%c0_3, %c0_4] : memref<16x128xf32, #tpu.memory_space<vmem>>, vector<16x128xf32>
    tpu.vector_store %arg2[%c0_3, %c0_4], %14 {strides = array<i32>} : memref<16x128xf32, #tpu.memory_space<vmem>>, vector<16x128xf32>,
    return
  }
  func.func @transform_0(%arg0: i32) -> (i32, i32) {
    %c0_i32 = arith.constant 0 : i32
    %c0_i32_0 = arith.constant 0 : i32
    %c0_i32_1 = arith.constant 0 : i32
    return %c0_i32, %c0_i32_0 : i32, i32
  }
  func.func @transform_1(%arg0: i32) -> (i32, i32) {
    %c0_i32 = arith.constant 0 : i32
    %c0_i32_0 = arith.constant 0 : i32
    %c0_i32_1 = arith.constant 0 : i32
    return %c0_i32, %c0_i32_0 : i32, i32
  }
}

</mosaic_0001>

<llo_original>
// kernel: lin_norm.1
$region0: #{lin_norm.1}
  #allocation0 [shape = 'u32[]', space=smem, size = 0x4, offset = 0x4, fixed_abs, tag = 'smem constant byte address 0x4 - core index']
  #allocation1 [shape = 'u32[144,128]{1,0:T(1,128)}', space=vmem, size = 0x12000, scoped, tag = 'internal scratch']
  %s0 = inlined_call_operand.vmem [shape: f32[16,128], index: 0, kind: input, shape index: {}]
  %s1 = inlined_call_operand.vmem [shape: f32[16,128], index: 1, kind: output, shape index: {}]
  %s2 = sld [smem:[#allocation0]]
  $region14: #{lin_norm.1} parent=0
    _
  %s4 = ssub.s32 1, %s2
  %s5 = scalar_select 0, %s4, %s2
  // Predicated region
  $region2: #{lin_norm.1} parent=0 // pred_check
    _
  $region3: #{lin_norm.1} parent=0 // pred_check_branch
    %7 = sbr.rel (0) target = $region5
  $region4: #{lin_norm.1} parent=0 // pred_region
    _
  $region5: #{lin_norm.1} parent=0 // pred_fallthru
    _
  %v8 = vld [vmem:[%s0] sm:$0xff]
  %v9 = vld [vmem:[%s0 + $0x8] sm:$0xff]
  %v10 = vmin.f32 %v8, %v9
  %11 = vmin.xlane.f32.xlu0 %v10
  %v12 = vpop.xlane.xlu0 %11
  %v13 = vrot.slane %v12, 4
  %v14 = vmin.f32 %v12, %v13
  %v15 = vrot.slane %v14, 2
  %v16 = vmin.f32 %v14, %v15
  %v17 = vrot.slane %v16, 1
  %v18 = vmin.f32 %v16, %v17
  %s19 = vtos %v18
  %v20 = vmax.f32 %v8, %v9
  %21 = vmax.xlane.f32.xlu0 %v20
  %v22 = vpop.xlane.xlu0 %21
  %v23 = vrot.slane %v22, 4
  %v24 = vmax.f32 %v22, %v23
  %v25 = vrot.slane %v24, 2
  %v26 = vmax.f32 %v24, %v25
  %v27 = vrot.slane %v26, 1
  %v28 = vmax.f32 %v26, %v27
  %s29 = vtos %v28
  %s30 = ssub.f32 %s29, %s19
  %v31 = vstv %s30
  %v32 = vrcp.pop %v31
  %s33 = vtos %v32
  %v34 = vstv %s19
  %v35 = vsub.f32 %v8, %v34
  %v36 = vsub.f32 %v9, %v34
  %v37 = vstv %s33
  %v38 = vmul.f32 %v35, %v37
  %v39 = vmul.f32 %v36, %v37
  %40 = vst [vmem:[%s1] sm:$0xff] %v38
  %41 = vst [vmem:[%s1 + $0x8] sm:$0xff] %v39
  // Predicated region
  $region6: #{lin_norm.1} parent=0 // pred_check
    _
  $region7: #{lin_norm.1} parent=0 // pred_check_branch
    %43 = sbr.rel (0) target = $region9
  $region8: #{lin_norm.1} parent=0 // pred_region
    _
  $region9: #{lin_norm.1} parent=0 // pred_fallthru
    _
  // Predicated region
  $region10: #{lin_norm.1} parent=0 // pred_check
    _
  $region11: #{lin_norm.1} parent=0 // pred_check_branch
    %45 = sbr.rel (0) target = $region13
  $region12: #{lin_norm.1} parent=0 // pred_region
    _
  $region13: #{lin_norm.1} parent=0 // pred_fallthru
    _

</llo_original>
